<compile_context>
chip_gen: v5e
topology: v5e:2x2
jax: 0.10.0
libtpu: 0.0.40
codegen_flags: <defaults>
</compile_context>

<pallas_src>
import jax
import jax.numpy as jnp
from jax.experimental import pallas as pl
from jax.experimental.pallas import tpu as pltpu


def _round_up(x, m):
    return ((x + m - 1) // m) * m


def _lstm_cell_kernel(xh_ref, c_ref, w_ref, b_ref, out_ref):
    """One fused LSTM cell step on a batch tile.

    xh_ref : (tb, IN+H)      concat([x, h0], -1)
    c_ref  : (tb, Hp)        c0 (zero-padded to Hp lanes)
    w_ref  : (IN+H, 4*Hp)    fused [W_ih^T ; W_hh^T], gate-lane-aligned columns
    b_ref  : (1, 4*Hp)       fused bias (b_ih + b_hh), f32
    out_ref: (tb, 2*Hp)      [h1 | c1] packed along lanes
    """
    # Single MXU matmul; operands cast to the stored weight dtype (bf16-ready),
    # accumulation in f32.
    xh = xh_ref[...].astype(w_ref.dtype)
    gates = jnp.dot(xh, w_ref[...], preferred_element_type=jnp.float32)
    gates = gates + b_ref[...]                      # (1, 4*Hp) broadcasts, f32

    Hp = c_ref.shape[-1]
    # All slices are 128-lane aligned (Hp is a multiple of 128).
    i_g = jax.nn.sigmoid(gates[:, 0 * Hp:1 * Hp])
    f_g = jax.nn.sigmoid(gates[:, 1 * Hp:2 * Hp])
    g_g = jnp.tanh(gates[:, 2 * Hp:3 * Hp])
    o_g = jax.nn.sigmoid(gates[:, 3 * Hp:4 * Hp])

    c0 = c_ref[...].astype(jnp.float32)
    c1 = f_g * c0 + i_g * g_g
    h1 = o_g * jnp.tanh(c1)

    # Two 128-aligned, unmasked stores into the packed output slab.
    out_ref[:, 0:Hp] = h1.astype(out_ref.dtype)
    out_ref[:, Hp:2 * Hp] = c1.astype(out_ref.dtype)


def prepare_lstm_params(w_ih, w_hh, b_ih, b_hh, compute_dtype=None):
    """One-time (hoisted) weight preparation.

    w_ih : (4H, IN), w_hh : (4H, H), b_ih/b_hh : (4H,)
    Returns fused, gate-lane-aligned parameters reusable across every step.
    """
    four_h, IN = w_ih.shape
    H = four_h // 4
    assert w_hh.shape == (4 * H, H)
    Hp = _round_up(H, 128)
    K = IN + H
    w_dtype = w_ih.dtype if compute_dtype is None else compute_dtype

    # Fused weight: rows = [W_ih^T ; W_hh^T], columns scattered so gate g
    # occupies lanes [g*Hp, g*Hp + H). Padding lanes are zero, so padded gate
    # columns compute sigmoid(0)=0.5 / tanh(0)=0 and yield exactly-zero c1/h1
    # lanes that get sliced off by the wrapper.
    w_cat = jnp.concatenate([jnp.transpose(w_ih), jnp.transpose(w_hh)], axis=0)
    bias = b_ih + b_hh

    w_pad = jnp.zeros((K, 4 * Hp), w_dtype)
    b_pad = jnp.zeros((1, 4 * Hp), jnp.float32)
    for g in range(4):
        w_pad = w_pad.at[:, g * Hp:g * Hp + H].set(
            w_cat[:, g * H:(g + 1) * H].astype(w_dtype))
        b_pad = b_pad.at[0, g * Hp:g * Hp + H].set(
            bias[g * H:(g + 1) * H].astype(jnp.float32))

    return {"w": w_pad, "b": b_pad, "IN": IN, "H": H, "Hp": Hp, "K": K}


def lstm_adapter_forward(input_, hidden, params, attended_args=None,
                         device=None):
    """Pallas equivalent of LSTMAdapter.forward.

    input_ : (B, IN)
    hidden : (h0, c0), each (1, B, H)   (PyTorch num_layers=1 convention)
    params : output of prepare_lstm_params (precomputed once, reused per step)
    returns (h1, c1), each (1, B, H)
    """
    if attended_args is not None:
        raise ValueError('LSTM doesnt use the arg "attended"')
    del device  # glue-level concept; arrays already live on the TPU backend

    h0, c0 = hidden
    B, IN = input_.shape
    H, Hp, K = params["H"], params["Hp"], params["K"]
    assert IN == params["IN"]
    w, b = params["w"], params["b"]

    h0_2d = h0.reshape(B, H)
    c0_2d = c0.reshape(B, H)

    # Per-step activation glue only (weights untouched here).
    xh = jnp.concatenate([input_, h0_2d], axis=-1)            # (B, K)

    # Batch tiling: pad B to f32-sublane multiple of 8; tile so large batches
    # get >1 grid point (sharded across TensorCores on v7x via "parallel").
    tb = min(128, _round_up(B, 8))
    B_pad = _round_up(B, tb)
    if B_pad != B:
        xh = jnp.pad(xh, ((0, B_pad - B), (0, 0)))
        c0_2d = jnp.pad(c0_2d, ((0, B_pad - B), (0, 0)))
    if Hp != H:
        c0_2d = jnp.pad(c0_2d, ((0, 0), (0, Hp - H)))
    nb = B_pad // tb

    # VMEM budget: blocks x (double buffering + slack), clamped to 64 MiB so
    # the same setting is valid on v7x (64 MiB VMEM) as well as v5e/v6e.
    act_isz = jnp.dtype(input_.dtype).itemsize
    w_isz = jnp.dtype(w.dtype).itemsize
    blk_bytes = ((tb * K + tb * Hp + tb * 2 * Hp) * act_isz
                 + (K * 4 * Hp + 4 * Hp) * w_isz)
    vmem_limit = int(min(64 * 1024 * 1024,
                         max(32 * 1024 * 1024, 3 * blk_bytes)))

    out = pl.pallas_call(
        _lstm_cell_kernel,
        out_shape=jax.ShapeDtypeStruct((B_pad, 2 * Hp), input_.dtype),
        grid=(nb,),
        in_specs=[
            pl.BlockSpec((tb, K), lambda i: (i, 0)),          # [x, h0]
            pl.BlockSpec((tb, Hp), lambda i: (i, 0)),         # c0
            pl.BlockSpec((K, 4 * Hp), lambda i: (0, 0)),      # fused weights
            pl.BlockSpec((1, 4 * Hp), lambda i: (0, 0)),      # fused bias
        ],
        out_specs=pl.BlockSpec((tb, 2 * Hp), lambda i: (i, 0)),
        compiler_params=pltpu.CompilerParams(
            dimension_semantics=("parallel",),
            vmem_limit_bytes=vmem_limit,
        ),
    )(xh, c0_2d, w, b)

    h1 = out[:B, 0:H]
    c1 = out[:B, Hp:Hp + H]
    return h1.reshape(1, B, H), c1.reshape(1, B, H)


def _reference_lstm_step(input_, hidden, w_ih, w_hh, b_ih, b_hh):
    """Pure-JAX reference (matches torch.nn.LSTM single-step semantics)."""
    h0, c0 = hidden
    B = input_.shape[0]
    H = h0.shape[-1]
    h0 = h0.reshape(B, H).astype(jnp.float32)
    c0 = c0.reshape(B, H).astype(jnp.float32)
    gates = input_.astype(jnp.float32) @ w_ih.T + b_ih + h0 @ w_hh.T + b_hh
    i_g = jax.nn.sigmoid(gates[:, 0 * H:1 * H])
    f_g = jax.nn.sigmoid(gates[:, 1 * H:2 * H])
    g_g = jnp.tanh(gates[:, 2 * H:3 * H])
    o_g = jax.nn.sigmoid(gates[:, 3 * H:4 * H])
    c1 = f_g * c0 + i_g * g_g
    h1 = o_g * jnp.tanh(c1)
    return h1.reshape(1, B, H), c1.reshape(1, B, H)


if __name__ == "__main__":
    B, IN, H = 2, 32, 32
    key = jax.random.PRNGKey(0)
    ks = jax.random.split(key, 7)

    # Deterministic parameter init, PyTorch-style uniform(-1/sqrt(H), 1/sqrt(H)).
    bound = 1.0 / (H ** 0.5)
    w_ih = jax.random.uniform(ks[0], (4 * H, IN), jnp.float32, -bound, bound)
    w_hh = jax.random.uniform(ks[1], (4 * H, H), jnp.float32, -bound, bound)
    b_ih = jax.random.uniform(ks[2], (4 * H,), jnp.float32, -bound, bound)
    b_hh = jax.random.uniform(ks[3], (4 * H,), jnp.float32, -bound, bound)

    x = jax.random.normal(ks[4], (B, IN), jnp.float32)
    h0 = jax.random.normal(ks[5], (1, B, H), jnp.float32)
    c0 = jax.random.normal(ks[6], (1, B, H), jnp.float32)

    # Hoisted one-time weight fusion (reused across timesteps by a caller).
    params = prepare_lstm_params(w_ih, w_hh, b_ih, b_hh)

    h1, c1 = lstm_adapter_forward(x, (h0, c0), params, None, None)
    jax.block_until_ready((h1, c1))

    h1_ref, c1_ref = _reference_lstm_step(x, (h0, c0), w_ih, w_hh, b_ih, b_hh)
    assert h1.shape == (1, B, H) and c1.shape == (1, B, H)
    assert jnp.allclose(h1, h1_ref, atol=1e-5, rtol=1e-5)
    assert jnp.allclose(c1, c1_ref, atol=1e-5, rtol=1e-5)

    print("KERNEL_OK")
</pallas_src>

<mosaic_0001>
module attributes {stable_mosaic.version = 11 : i64} {
  func.func @_lstm_cell_kernel(%arg0: i32, %arg1: memref<8x64xf32, #tpu.memory_space<vmem>>, %arg2: memref<8x128xf32, #tpu.memory_space<vmem>>, %arg3: memref<64x512xf32, #tpu.memory_space<vmem>>, %arg4: memref<1x512xf32, #tpu.memory_space<vmem>>, %arg5: memref<8x256xf32, #tpu.memory_space<vmem>>) attributes {dimension_semantics = [#tpu.dimension_semantics<parallel>], iteration_bounds = array<i64: 1>, scalar_prefetch = 0 : i64, scratch_operands = 0 : i64, tpu.core_type = #tpu.core_type<tc>, window_params = [{transform_indices = @transform_0, window_bounds = array<i64: 8, 64>}, {transform_indices = @transform_1, window_bounds = array<i64: 8, 128>}, {pipeline_mode = #tpu.pipeline_mode<synchronous>, transform_indices = @transform_2, window_bounds = array<i64: 64, 512>}, {pipeline_mode = #tpu.pipeline_mode<synchronous>, transform_indices = @transform_3, window_bounds = array<i64: 1, 512>}, {transform_indices = @transform_4, window_bounds = array<i64: 8, 256>}]} {
    %c0 = arith.constant 0 : index
    %c0_0 = arith.constant 0 : index
    %0 = vector.load %arg1[%c0, %c0_0] : memref<8x64xf32, #tpu.memory_space<vmem>>, vector<8x64xf32>
    %c0_1 = arith.constant 0 : index
    %c0_2 = arith.constant 0 : index
    %1 = vector.load %arg3[%c0_1, %c0_2] : memref<64x512xf32, #tpu.memory_space<vmem>>, vector<64x512xf32>
    %cst = arith.constant dense<0.000000e+00> : vector<8x512xf32>
    %2 = tpu.matmul %0, %1, %cst {dimension_numbers = #tpu.dot_dimension_numbers<[1], [0], [0], [1], [0, 0, 1, 1], [], []>} : vector<8x64xf32>, vector<64x512xf32>, vector<8x512xf32> -> vector<8x512xf32>
    %c0_3 = arith.constant 0 : index
    %c0_4 = arith.constant 0 : index
    %3 = vector.load %arg4[%c0_3, %c0_4] : memref<1x512xf32, #tpu.memory_space<vmem>>, vector<1x512xf32>
    %4 = vector.broadcast %3 : vector<1x512xf32> to vector<8x512xf32>
    %5 = arith.addf %2, %4 : vector<8x512xf32>
    %6 = vector.extract_strided_slice %5 {offsets = [0, 0], sizes = [8, 128], strides = [1, 1]} : vector<8x512xf32> to vector<8x128xf32>
    %7 = arith.negf %6 : vector<8x128xf32>
    %8 = math.exp %7 : vector<8x128xf32>
    %cst_5 = arith.constant 1.000000e+00 : f32
    %9 = vector.broadcast %cst_5 : f32 to vector<8x128xf32>
    %10 = arith.addf %9, %8 : vector<8x128xf32>
    %11 = arith.divf %9, %10 : vector<8x128xf32>
    %12 = vector.extract_strided_slice %5 {offsets = [0, 128], sizes = [8, 128], strides = [1, 1]} : vector<8x512xf32> to vector<8x128xf32>
    %13 = arith.negf %12 : vector<8x128xf32>
    %14 = math.exp %13 : vector<8x128xf32>
    %cst_6 = arith.constant 1.000000e+00 : f32
    %15 = vector.broadcast %cst_6 : f32 to vector<8x128xf32>
    %16 = arith.addf %15, %14 : vector<8x128xf32>
    %17 = arith.divf %15, %16 : vector<8x128xf32>
    %18 = vector.extract_strided_slice %5 {offsets = [0, 256], sizes = [8, 128], strides = [1, 1]} : vector<8x512xf32> to vector<8x128xf32>
    %19 = math.tanh %18 : vector<8x128xf32>
    %20 = vector.extract_strided_slice %5 {offsets = [0, 384], sizes = [8, 128], strides = [1, 1]} : vector<8x512xf32> to vector<8x128xf32>
    %21 = arith.negf %20 : vector<8x128xf32>
    %22 = math.exp %21 : vector<8x128xf32>
    %cst_7 = arith.constant 1.000000e+00 : f32
    %23 = vector.broadcast %cst_7 : f32 to vector<8x128xf32>
    %24 = arith.addf %23, %22 : vector<8x128xf32>
    %25 = arith.divf %23, %24 : vector<8x128xf32>
    %c0_8 = arith.constant 0 : index
    %c0_9 = arith.constant 0 : index
    %26 = vector.load %arg2[%c0_8, %c0_9] : memref<8x128xf32, #tpu.memory_space<vmem>>, vector<8x128xf32>
    %27 = arith.mulf %17, %26 : vector<8x128xf32>
    %28 = arith.mulf %11, %19 : vector<8x128xf32>
    %29 = arith.addf %27, %28 : vector<8x128xf32>
    %30 = math.tanh %29 : vector<8x128xf32>
    %31 = arith.mulf %25, %30 : vector<8x128xf32>
    %c0_10 = arith.constant 0 : index
    %c0_11 = arith.constant 0 : index
    %32 = vector.load %arg5[%c0_10, %c0_11] : memref<8x256xf32, #tpu.memory_space<vmem>>, vector<8x128xf32>
    tpu.vector_store %arg5[%c0_10, %c0_11], %31 {strides = array<i32>} : memref<8x256xf32, #tpu.memory_space<vmem>>, vector<8x128xf32>,
    %c0_12 = arith.constant 0 : index
    %c128 = arith.constant 128 : index
    %33 = vector.load %arg5[%c0_12, %c128] : memref<8x256xf32, #tpu.memory_space<vmem>>, vector<8x128xf32>
    tpu.vector_store %arg5[%c0_12, %c128], %29 {strides = array<i32>} : memref<8x256xf32, #tpu.memory_space<vmem>>, vector<8x128xf32>,
    return
  }
  func.func @transform_0(%arg0: i32) -> (i32, i32) {
    %c0_i32 = arith.constant 0 : i32
    %c0_i32_0 = arith.constant 0 : i32
    return %arg0, %c0_i32 : i32, i32
  }
  func.func @transform_1(%arg0: i32) -> (i32, i32) {
    %c0_i32 = arith.constant 0 : i32
    %c0_i32_0 = arith.constant 0 : i32
    return %arg0, %c0_i32 : i32, i32
  }
  func.func @transform_2(%arg0: i32) -> (i32, i32) {
    %c0_i32 = arith.constant 0 : i32
    %c0_i32_0 = arith.constant 0 : i32
    %c0_i32_1 = arith.constant 0 : i32
    return %c0_i32, %c0_i32_0 : i32, i32
  }
  func.func @transform_3(%arg0: i32) -> (i32, i32) {
    %c0_i32 = arith.constant 0 : i32
    %c0_i32_0 = arith.constant 0 : i32
    %c0_i32_1 = arith.constant 0 : i32
    return %c0_i32, %c0_i32_0 : i32, i32
  }
  func.func @transform_4(%arg0: i32) -> (i32, i32) {
    %c0_i32 = arith.constant 0 : i32
    %c0_i32_0 = arith.constant 0 : i32
    return %arg0, %c0_i32 : i32, i32
  }
}

</mosaic_0001>

<llo_original>
// kernel: tpu_custom_call.1
$region0: #{tpu_custom_call.1}
  #allocation0 [shape = 'u32[]', space=smem, size = 0x4, offset = 0x4, fixed_abs, tag = 'smem constant byte address 0x4 - core index']
  #allocation1 [shape = 'u32[72,128]{1,0:T(1,128)}', space=vmem, size = 0x9000, scoped, tag = 'internal scratch']
  %s0 = inlined_call_operand.hbm [shape: f32[8,64], index: 0, kind: input, shape index: {}]
  %s1 = inlined_call_operand.hbm [shape: f32[8,128], index: 1, kind: input, shape index: {}]
  %s2 = inlined_call_operand.hbm [shape: f32[64,512], index: 2, kind: input, shape index: {}]
  %s3 = inlined_call_operand.hbm [shape: f32[1,512], index: 3, kind: input, shape index: {}]
  %s4 = inlined_call_operand.hbm [shape: f32[8,256], index: 4, kind: output, shape index: {}]
  %s5 = sld [smem:[#allocation0]]
  $region42: #{tpu_custom_call.1} parent=0
    _
  %s7 = ssub.s32 1, %s5
  %s8 = scalar_select 0, %s7, %s5
  $region1: #{tpu_custom_call.1} parent=0
    #allocation2 [shape = 'u8[4096]{0}', space=vmem, size = 0x1000, scoped, tag = 'input window, operand 0, single buffered']
    #allocation3 [shape = 's32[1]{0}', space=sflag, size = 0x4, scoped, tag = 'scoped memory for tpu_custom_call.1']
    #allocation4 [shape = 's32[1]{0}', space=sflag, size = 0x4, scoped, tag = 'scoped memory for tpu_custom_call.1']
    #allocation5 [shape = 'u8[4096]{0}', space=vmem, size = 0x1000, scoped, tag = 'input window, operand 1, single buffered']
    #allocation6 [shape = 's32[1]{0}', space=sflag, size = 0x4, scoped, tag = 'scoped memory for tpu_custom_call.1']
    #allocation7 [shape = 'u8[131072]{0}', space=vmem, size = 0x20000, scoped, tag = 'input window, operand 2, single buffered']
    #allocation8 [shape = 'u8[2048]{0}', space=vmem, size = 0x800, scoped, tag = 'input window, operand 3, single buffered']
    #allocation9 [shape = 's32[1]{0}', space=sflag, size = 0x4, scoped, tag = 'scoped memory for tpu_custom_call.1']
    #allocation10 [shape = 'u8[8192]{0}', space=vmem, size = 0x2000, scoped, tag = 'output window, operand 0, single buffered']
    %9 = vsyncpa [#allocation3], 0
    %10 = vsyncpa [#allocation6], 0
    %11 = vsyncpa [#allocation9], 0
    %12 = vsyncpa [#allocation4], 0
    // Predicated region
    $region2: #{tpu_custom_call.1} parent=1 // pred_check
      _
    $region3: #{tpu_custom_call.1} parent=1 // pred_check_branch
      %14 = sbr.rel (0) target = $region5
    $region4: #{tpu_custom_call.1} parent=1 // pred_region
      %16 = vsyncadd [#allocation3], 0
      %s18 = sshll.u32 %s0, 4
      %s19 = int_to_ptr.hbm [resolvable:$true] %s18
      %s20 = sshll.u32 [#allocation2], 4
      %s21 = int_to_ptr.vmem [resolvable:$true] %s20
      %23 = dma.hbm_to_vmem [thread:$0]  %s19, 128, %s21, [#allocation3]
    $region5: #{tpu_custom_call.1} parent=1 // pred_fallthru
      _
    // Predicated region
    $region6: #{tpu_custom_call.1} parent=1 // pred_check
      _
    $region7: #{tpu_custom_call.1} parent=1 // pred_check_branch
      %25 = sbr.rel (0) target = $region9
    $region8: #{tpu_custom_call.1} parent=1 // pred_region
      %27 = vsyncadd [#allocation6], 0
      %s29 = sshll.u32 %s1, 4
      %s30 = int_to_ptr.hbm [resolvable:$true] %s29
      %s31 = sshll.u32 [#allocation5], 4
      %s32 = int_to_ptr.vmem [resolvable:$true] %s31
      %34 = dma.hbm_to_vmem [thread:$0]  %s30, 128, %s32, [#allocation6]
    $region9: #{tpu_custom_call.1} parent=1 // pred_fallthru
      _
    // Predicated region
    $region10: #{tpu_custom_call.1} parent=1 // pred_check
      _
    $region11: #{tpu_custom_call.1} parent=1 // pred_check_branch
      %36 = sbr.rel (0) target = $region13
    $region12: #{tpu_custom_call.1} parent=1 // pred_region
      %38 = vsyncadd [#allocation6], 0
      %s39 = sshll.u32 %s2, 4
      %s40 = int_to_ptr.hbm [resolvable:$true] %s39
      %s41 = sshll.u32 [#allocation7], 4
      %s42 = int_to_ptr.vmem [resolvable:$true] %s41
      %47 = dma.hbm_to_vmem [thread:$0]  %s40, 4096, %s42, [#allocation6], 512, 512, 32
    $region13: #{tpu_custom_call.1} parent=1 // pred_fallthru
      _
    // Predicated region
    $region14: #{tpu_custom_call.1} parent=1 // pred_check
      _
    $region15: #{tpu_custom_call.1} parent=1 // pred_check_branch
      %49 = sbr.rel (0) target = $region17
    $region16: #{tpu_custom_call.1} parent=1 // pred_region
      %51 = vsyncadd [#allocation9], 0
      %s53 = sshll.u32 %s3, 4
      %s54 = int_to_ptr.hbm [resolvable:$true] %s53
      %s55 = sshll.u32 [#allocation8], 4
      %s56 = int_to_ptr.vmem [resolvable:$true] %s55
      %58 = dma.hbm_to_vmem [thread:$0]  %s54, 64, %s56, [#allocation9]
    $region17: #{tpu_custom_call.1} parent=1 // pred_fallthru
      _
    // Predicated region
    $region18: #{tpu_custom_call.1} parent=1 // pred_check
      _
    $region19: #{tpu_custom_call.1} parent=1 // pred_check_branch
      %60 = sbr.rel (0) target = $region21
    $region20: #{tpu_custom_call.1} parent=1 // pred_region
      %62 = dma.done [#allocation3], 128
    $region21: #{tpu_custom_call.1} parent=1 // pred_fallthru
      _
    // Predicated region
    $region22: #{tpu_custom_call.1} parent=1 // pred_check
      _
    $region23: #{tpu_custom_call.1} parent=1 // pred_check_branch
      %64 = sbr.rel (0) target = $region25
    $region24: #{tpu_custom_call.1} parent=1 // pred_region
      %66 = dma.done [#allocation6], 128
    $region25: #{tpu_custom_call.1} parent=1 // pred_fallthru
      _
    // Predicated region
    $region26: #{tpu_custom_call.1} parent=1 // pred_check
      _
    $region27: #{tpu_custom_call.1} parent=1 // pred_check_branch
      %68 = sbr.rel (0) target = $region29
    $region28: #{tpu_custom_call.1} parent=1 // pred_region
      %70 = dma.done [#allocation6], 4096
    $region29: #{tpu_custom_call.1} parent=1 // pred_fallthru
      _
    // Predicated region
    $region30: #{tpu_custom_call.1} parent=1 // pred_check
      _
    $region31: #{tpu_custom_call.1} parent=1 // pred_check_branch
      %72 = sbr.rel (0) target = $region33
    $region32: #{tpu_custom_call.1} parent=1 // pred_region
      %74 = dma.done [#allocation9], 64
    $region33: #{tpu_custom_call.1} parent=1 // pred_fallthru
      _
    %v75 = vld [vmem:[#allocation2] sm:$0xff]
    %v76 = vld [vmem:[#allocation7] sm:$0xff]
    %v77 = vld [vmem:[#allocation7 + $0x8] sm:$0xff]
    %v78 = vld [vmem:[#allocation7 + $0x10] sm:$0xff]
    %v79 = vld [vmem:[#allocation7 + $0x18] sm:$0xff]
    %v80 = vld [vmem:[#allocation7 + $0x20] sm:$0xff]
    %v81 = vld [vmem:[#allocation7 + $0x28] sm:$0xff]
    %v82 = vld [vmem:[#allocation7 + $0x30] sm:$0xff]
    %v83 = vld [vmem:[#allocation7 + $0x38] sm:$0xff]
    %v84 = vld [vmem:[#allocation7 + $0x40] sm:$0xff]
    %v85 = vld [vmem:[#allocation7 + $0x48] sm:$0xff]
    %v86 = vld [vmem:[#allocation7 + $0x50] sm:$0xff]
    %v87 = vld [vmem:[#allocation7 + $0x58] sm:$0xff]
    %v88 = vld [vmem:[#allocation7 + $0x60] sm:$0xff]
    %v89 = vld [vmem:[#allocation7 + $0x68] sm:$0xff]
    %v90 = vld [vmem:[#allocation7 + $0x70] sm:$0xff]
    %v91 = vld [vmem:[#allocation7 + $0x78] sm:$0xff]
    %v92 = vld [vmem:[#allocation7 + $0x80] sm:$0xff]
    %v93 = vld [vmem:[#allocation7 + $0x88] sm:$0xff]
    %v94 = vld [vmem:[#allocation7 + $0x90] sm:$0xff]
    %v95 = vld [vmem:[#allocation7 + $0x98] sm:$0xff]
    %v96 = vld [vmem:[#allocation7 + $0xa0] sm:$0xff]
    %v97 = vld [vmem:[#allocation7 + $0xa8] sm:$0xff]
    %v98 = vld [vmem:[#allocation7 + $0xb0] sm:$0xff]
    %v99 = vld [vmem:[#allocation7 + $0xb8] sm:$0xff]
    %v100 = vld [vmem:[#allocation7 + $0xc0] sm:$0xff]
    %v101 = vld [vmem:[#allocation7 + $0xc8] sm:$0xff]
    %v102 = vld [vmem:[#allocation7 + $0xd0] sm:$0xff]
    %v103 = vld [vmem:[#allocation7 + $0xd8] sm:$0xff]
    %v104 = vld [vmem:[#allocation7 + $0xe0] sm:$0xff]
    %v105 = vld [vmem:[#allocation7 + $0xe8] sm:$0xff]
    %v106 = vld [vmem:[#allocation7 + $0xf0] sm:$0xff]
    %v107 = vld [vmem:[#allocation7 + $0xf8] sm:$0xff]
    %v108 = vld [vmem:[#allocation8] sm:$0xf]
    %v110 = vperm.slane %v108, 0
    %v111 = vperm.slane %v108, 1
    %v112 = vperm.slane %v108, 2
    %v113 = vperm.slane %v108, 3
    %vm118 = vcmask 523264
    %v120 = vsel %vm118, %v75, 0
    %122 = vmatpush.msra.mxu0 0.0
    %123 = vmatpush.msra.mxu0 0.0
    %124 = vmatpush.msra.mxu0 0.0
    %125 = vmatpush.msra.mxu0 0.0
    %126 = vmatpush.msra.mxu0 0.0
    %127 = vmatpush.msra.mxu0 0.0
    %128 = vmatpush.msra.mxu0 0.0
    %129 = vmatpush.msra.mxu0 0.0
    %130 = vmatpush.msra.mxu0 %v104
    %131 = vmatpush.msra.mxu0 %v100
    %132 = vmatpush.msra.mxu0 %v96
    %133 = vmatpush.msra.mxu0 %v92
    %134 = vmatpush.msra.mxu0 %v88
    %135 = vmatpush.msra.mxu0 %v84
    %136 = vmatpush.msra.mxu0 %v80
    %137 = vmatpush.msra.mxu0 %v76
    %138 = vmatmul.f32.gmra.mxu0 %v120
    %v139 = vpop.f32.mrf.mxu0
    %v140 = vadd.f32 %v110, %v139
    %141 = vdwg.mxu0
    %142 = vmatpush.msra.mxu0 0.0
    %143 = vmatpush.msra.mxu0 0.0
    %144 = vmatpush.msra.mxu0 0.0
    %145 = vmatpush.msra.mxu0 0.0
    %146 = vmatpush.msra.mxu0 0.0
    %147 = vmatpush.msra.mxu0 0.0
    %148 = vmatpush.msra.mxu0 0.0
    %149 = vmatpush.msra.mxu0 0.0
    %150 = vmatpush.msra.mxu0 %v105
    %151 = vmatpush.msra.mxu0 %v101
    %152 = vmatpush.msra.mxu0 %v97
    %153 = vmatpush.msra.mxu0 %v93
    %154 = vmatpush.msra.mxu0 %v89
    %155 = vmatpush.msra.mxu0 %v85
    %156 = vmatpush.msra.mxu0 %v81
    %157 = vmatpush.msra.mxu0 %v77
    %158 = vmatmul.f32.gmra.mxu0 %v120
    %v159 = vpop.f32.mrf.mxu0
    %v160 = vadd.f32 %v111, %v159
    %161 = vdwg.mxu0
    %162 = vmatpush.msra.mxu0 0.0
    %163 = vmatpush.msra.mxu0 0.0
    %164 = vmatpush.msra.mxu0 0.0
    %165 = vmatpush.msra.mxu0 0.0
    %166 = vmatpush.msra.mxu0 0.0
    %167 = vmatpush.msra.mxu0 0.0
    %168 = vmatpush.msra.mxu0 0.0
    %169 = vmatpush.msra.mxu0 0.0
    %170 = vmatpush.msra.mxu0 %v106
    %171 = vmatpush.msra.mxu0 %v102
    %172 = vmatpush.msra.mxu0 %v98
    %173 = vmatpush.msra.mxu0 %v94
    %174 = vmatpush.msra.mxu0 %v90
    %175 = vmatpush.msra.mxu0 %v86
    %176 = vmatpush.msra.mxu0 %v82
    %177 = vmatpush.msra.mxu0 %v78
    %178 = vmatmul.f32.gmra.mxu0 %v120
    %v179 = vpop.f32.mrf.mxu0
    %v180 = vadd.f32 %v112, %v179
    %181 = vdwg.mxu0
    %182 = vmatpush.msra.mxu0 0.0
    %183 = vmatpush.msra.mxu0 0.0
    %184 = vmatpush.msra.mxu0 0.0
    %185 = vmatpush.msra.mxu0 0.0
    %186 = vmatpush.msra.mxu0 0.0
    %187 = vmatpush.msra.mxu0 0.0
    %188 = vmatpush.msra.mxu0 0.0
    %189 = vmatpush.msra.mxu0 0.0
    %190 = vmatpush.msra.mxu0 %v107
    %191 = vmatpush.msra.mxu0 %v103
    %192 = vmatpush.msra.mxu0 %v99
    %193 = vmatpush.msra.mxu0 %v95
    %194 = vmatpush.msra.mxu0 %v91
    %195 = vmatpush.msra.mxu0 %v87
    %196 = vmatpush.msra.mxu0 %v83
    %197 = vmatpush.msra.mxu0 %v79
    %198 = vmatmul.f32.gmra.mxu0 %v120
    %v199 = vpop.f32.mrf.mxu0
    %v200 = vadd.f32 %v113, %v199
    %201 = vdwg.mxu0
    %v202 = vxor.u32 %v140, 2147483648
    %v203 = vmul.f32 %v202, 1.442695
    %v204 = vpow.pop %v203
    %v205 = vadd.f32 %v204, 1.0
    %v206 = vrcp.pop %v205
    %v207 = vmul.f32 %v205, %v206
    %v208 = vsub.f32 1.0, %v207
    %v209 = vmul.f32 %v206, %v208
    %v210 = vadd.f32 %v206, %v209
    %vm211 = vweird.f32 %v205
    %vm212 = vweird.f32 %v206
    %vm213 = vmor %vm211, %vm212
    %v214 = vsel %vm213, %v206, %v210
    %v215 = vand.u32 2147483647, %v205
    %vm216 = vcmp.eq.f32.partialorder %v215, 8.507059e+37
    %v217 = vand.u32 %v205, 2147483648
    %v218 = vor.u32 1.1754944e-38, %v217
    %v219 = vsel %vm216, %v218, %v214
    %v220 = vmul.f32 1.0, %v219
    %v221 = vxor.u32 %v160, 2147483648
    %v222 = vmul.f32 %v221, 1.442695
    %v223 = vpow.pop %v222
    %v224 = vadd.f32 %v223, 1.0
    %v225 = vrcp.pop %v224
    %v226 = vmul.f32 %v224, %v225
    %v227 = vsub.f32 1.0, %v226
    %v228 = vmul.f32 %v225, %v227
    %v229 = vadd.f32 %v225, %v228
    %vm230 = vweird.f32 %v224
    %vm231 = vweird.f32 %v225
    %vm232 = vmor %vm230, %vm231
    %v233 = vsel %vm232, %v225, %v229
    %v234 = vand.u32 2147483647, %v224
    %vm235 = vcmp.eq.f32.partialorder %v234, 8.507059e+37
    %v236 = vand.u32 %v224, 2147483648
    %v237 = vor.u32 1.1754944e-38, %v236
    %v238 = vsel %vm235, %v237, %v233
    %v239 = vmul.f32 1.0, %v238
    %v240 = vtanh.pop %v180
    %v241 = vxor.u32 %v200, 2147483648
    %v242 = vmul.f32 %v241, 1.442695
    %v243 = vpow.pop %v242
    %v244 = vadd.f32 %v243, 1.0
    %v245 = vrcp.pop %v244
    %v246 = vmul.f32 %v244, %v245
    %v247 = vsub.f32 1.0, %v246
    %v248 = vmul.f32 %v245, %v247
    %v249 = vadd.f32 %v245, %v248
    %vm250 = vweird.f32 %v244
    %vm251 = vweird.f32 %v245
    %vm252 = vmor %vm250, %vm251
    %v253 = vsel %vm252, %v245, %v249
    %v254 = vand.u32 2147483647, %v244
    %vm255 = vcmp.eq.f32.partialorder %v254, 8.507059e+37
    %v256 = vand.u32 %v244, 2147483648
    %v257 = vor.u32 1.1754944e-38, %v256
    %v258 = vsel %vm255, %v257, %v253
    %v259 = vmul.f32 1.0, %v258
    %v260 = vld [vmem:[#allocation5] sm:$0xff]
    %v261 = vmul.f32 %v239, %v260
    %v262 = vmul.f32 %v220, %v240
    %v263 = vadd.f32 %v261, %v262
    %v264 = vtanh.pop %v263
    %v265 = vmul.f32 %v259, %v264
    %266 = vst [vmem:[#allocation10] sm:$0xff] %v265
    %267 = vst [vmem:[#allocation10 + $0x8] sm:$0xff] %v263
    // Predicated region
    $region34: #{tpu_custom_call.1} parent=1 // pred_check
      _
    $region35: #{tpu_custom_call.1} parent=1 // pred_check_branch
      %269 = sbr.rel (0) target = $region37
    $region36: #{tpu_custom_call.1} parent=1 // pred_region
      %271 = vsyncadd [#allocation4], 0
      %s273 = sshll.u32 [#allocation10], 4
      %s274 = int_to_ptr.vmem [resolvable:$true] %s273
      %s275 = sshll.u32 %s4, 4
      %s276 = int_to_ptr.hbm [resolvable:$true] %s275
      %278 = dma.vmem_to_hbm [thread:$0]  %s274, 256, %s276, [#allocation4]
    $region37: #{tpu_custom_call.1} parent=1 // pred_fallthru
      _
    // Predicated region
    $region38: #{tpu_custom_call.1} parent=1 // pred_check
      _
    $region39: #{tpu_custom_call.1} parent=1 // pred_check_branch
      %280 = sbr.rel (0) target = $region41
    $region40: #{tpu_custom_call.1} parent=1 // pred_region
      %282 = dma.done [#allocation4], 256
    $region41: #{tpu_custom_call.1} parent=1 // pred_fallthru
      _
    %283 = vsyncpa [#allocation3], 1
    %284 = vsyncpa [#allocation6], 1
    %285 = vsyncpa [#allocation9], 1
    %286 = vsyncpa [#allocation4], 1

</llo_original>
